<compile_context>
chip_gen: v7x
topology: tpu7x:2x2x1
jax: 0.10.0
libtpu: 0.0.40
codegen_flags: <defaults>
</compile_context>

<pallas_src>
import math
import jax
import jax.numpy as jnp
from jax.experimental import pallas as pl
from jax.experimental.pallas import tpu as pltpu


# ----------------------------------------------------------------------------
# Tiling / compiler-params helpers
# ----------------------------------------------------------------------------
def _vmem_limit():
    # generation-aware scoped-VMEM budget: ~5/8 of physical VMEM, capped at 100 MiB
    # (~40 MiB on v7x with 64 MiB/TC, ~80 MiB on v5e/v6e with 128 MiB).
    try:
        cap = getattr(pltpu.get_tpu_info(), "vmem_capacity_bytes", 128 * 1024 * 1024)
    except Exception:
        cap = 64 * 1024 * 1024
    return int(min(cap * 5 // 8, 100 * 1024 * 1024))


_VMEM_LIMIT = _vmem_limit()
_M_CAP = 256                    # sublane-axis tile cap (flattened activation rows)
_N_CAP = 512                    # lane-axis tile cap
_K_DIVS = (512, 256, 128)       # reduction-axis tile candidates (must divide exactly)


def _cparams(dims):
    return pltpu.CompilerParams(dimension_semantics=dims,
                                vmem_limit_bytes=_VMEM_LIMIT)


def _tile_pad(dim, cap):
    """Tile for an axis that tolerates edge padding (Pallas masks ragged edge blocks)."""
    if dim <= cap:
        return dim
    return max((cap // 8) * 8, 8)


def _tile_exact(dim, candidates=_K_DIVS):
    """Tile for a reduction axis: must divide exactly (padding would pollute the sum)."""
    for c in candidates:
        if dim >= c and dim % c == 0:
            return c
    return dim


# ----------------------------------------------------------------------------
# Pallas kernels
# ----------------------------------------------------------------------------
def _make_linear_kernel(relu):
    def kernel(x_ref, w_ref, b_ref, o_ref, acc_ref):
        @pl.when(pl.program_id(2) == 0)
        def _():
            acc_ref[...] = jnp.zeros_like(acc_ref)

        acc_ref[...] += jnp.dot(x_ref[...], w_ref[...],
                                preferred_element_type=jnp.float32)

        @pl.when(pl.program_id(2) == pl.num_programs(2) - 1)
        def _():
            y = acc_ref[...] + b_ref[...]          # f32 bias, added once at finalize
            if relu:
                y = jnp.maximum(y, 0.0)
            o_ref[...] = y.astype(o_ref.dtype)
    return kernel


def pallas_linear(x, w, b, relu=False, out_dtype=jnp.bfloat16):
    """y = x @ w + b.  x:(M,K) bf16, w:(K,N) bf16, b:(N,) f32 -> (M,N) out_dtype.
    M / N axes are cdiv-tiled (ragged edges masked); K tile divides exactly."""
    M, K = x.shape
    N = w.shape[1]
    tm = _tile_pad(M, _M_CAP)
    tn = _tile_pad(N, _N_CAP)
    tk = _tile_exact(K)
    cost = pl.CostEstimate(flops=int(2 * M * K * N), transcendentals=0,
                           bytes_accessed=int(2 * (M * K + K * N + M * N) + 4 * N))
    return pl.pallas_call(
        _make_linear_kernel(relu),
        grid=(pl.cdiv(M, tm), pl.cdiv(N, tn), K // tk),
        in_specs=[pl.BlockSpec((tm, tk), lambda i, j, k: (i, k)),
                  pl.BlockSpec((tk, tn), lambda i, j, k: (k, j)),
                  pl.BlockSpec((1, tn), lambda i, j, k: (0, j))],
        out_specs=pl.BlockSpec((tm, tn), lambda i, j, k: (i, j)),
        out_shape=jax.ShapeDtypeStruct((M, N), out_dtype),
        scratch_shapes=[pltpu.VMEM((tm, tn), jnp.float32)],
        compiler_params=_cparams(("parallel", "parallel", "arbitrary")),
        cost_estimate=cost,
    )(x, w, b.reshape(1, N))


def _ln_math(y, g, b):
    # LayerNorm math always in f32 (v5e VPU/EUP have no bf16).
    mu = jnp.mean(y, axis=-1, keepdims=True)
    yc = y - mu
    var = jnp.mean(yc * yc, axis=-1, keepdims=True)
    return yc * jax.lax.rsqrt(var + 1e-5) * g + b


def _add_ln_kernel(x_ref, r_ref, g_ref, b_ref, o_ref):
    y = x_ref[...].astype(jnp.float32) + r_ref[...].astype(jnp.float32)
    o_ref[...] = _ln_math(y, g_ref[...], b_ref[...]).astype(o_ref.dtype)


def pallas_add_layernorm(x, res, g, b):
    """LayerNorm(x + res) over the last dim (bf16 in/out, f32 math)."""
    M, D = x.shape
    tm = _tile_pad(M, _M_CAP)
    return pl.pallas_call(
        _add_ln_kernel,
        grid=(pl.cdiv(M, tm),),
        in_specs=[pl.BlockSpec((tm, D), lambda i: (i, 0)),
                  pl.BlockSpec((tm, D), lambda i: (i, 0)),
                  pl.BlockSpec((1, D), lambda i: (0, 0)),
                  pl.BlockSpec((1, D), lambda i: (0, 0))],
        out_specs=pl.BlockSpec((tm, D), lambda i: (i, 0)),
        out_shape=jax.ShapeDtypeStruct((M, D), jnp.bfloat16),
        compiler_params=_cparams(("parallel",)),
    )(x, res, g.reshape(1, D), b.reshape(1, D))


def _ffn_kernel(x_ref, w1_ref, b1_ref, w2_ref, b2_ref,
                g3_ref, bt3_ref, gd_ref, bd_ref, o_ref, od_ref):
    x = x_ref[...]                                                      # bf16 (tm, D)
    h = jnp.dot(x, w1_ref[...], preferred_element_type=jnp.float32) + b1_ref[...]
    h = jnp.maximum(h, 0.0).astype(jnp.bfloat16)                        # stays in VMEM
    y = (jnp.dot(h, w2_ref[...], preferred_element_type=jnp.float32)
         + b2_ref[...] + x.astype(jnp.float32))
    y = _ln_math(y, g3_ref[...], bt3_ref[...])                          # norm3 (f32)
    o_ref[...] = y.astype(o_ref.dtype)                                  # next layer's tgt
    od_ref[...] = _ln_math(y, gd_ref[...], bd_ref[...]).astype(od_ref.dtype)  # decoder norm


def pallas_ffn(x, w1, b1, w2, b2, g3, bt3, gd, bd):
    """One pass producing LayerNorm3(x + W2 relu(W1 x)) AND the decoder-level
    LayerNorm of it (the per-layer `intermediate` never re-reads the activations)."""
    M, D = x.shape
    Dff = w1.shape[1]
    tm = _tile_pad(M, _M_CAP)
    cost = pl.CostEstimate(flops=int(4 * M * D * Dff), transcendentals=0,
                           bytes_accessed=int(2 * (M * D + 2 * D * Dff) + 4 * 2 * M * D))
    # TODO(synk): on v7x, mark the full-extent weight specs with pipeline_mode=pl.Buffered(1)
    # once that API is confirmed on the deployed jax version, to avoid double-buffering them.
    return pl.pallas_call(
        _ffn_kernel,
        grid=(pl.cdiv(M, tm),),
        in_specs=[pl.BlockSpec((tm, D), lambda i: (i, 0)),
                  pl.BlockSpec((D, Dff), lambda i: (0, 0)),
                  pl.BlockSpec((1, Dff), lambda i: (0, 0)),
                  pl.BlockSpec((Dff, D), lambda i: (0, 0)),
                  pl.BlockSpec((1, D), lambda i: (0, 0)),
                  pl.BlockSpec((1, D), lambda i: (0, 0)),
                  pl.BlockSpec((1, D), lambda i: (0, 0)),
                  pl.BlockSpec((1, D), lambda i: (0, 0)),
                  pl.BlockSpec((1, D), lambda i: (0, 0))],
        out_specs=[pl.BlockSpec((tm, D), lambda i: (i, 0)),
                   pl.BlockSpec((tm, D), lambda i: (i, 0))],
        out_shape=(jax.ShapeDtypeStruct((M, D), jnp.bfloat16),
                   jax.ShapeDtypeStruct((M, D), jnp.float32)),
        compiler_params=_cparams(("parallel",)),
        cost_estimate=cost,
    )(x, w1, b1.reshape(1, Dff), w2, b2.reshape(1, D),
      g3.reshape(1, D), bt3.reshape(1, D), gd.reshape(1, D), bd.reshape(1, D))


def _mlp2_kernel(x_ref, w1_ref, b1_ref, w2_ref, b2_ref, o_ref):
    h = jnp.dot(x_ref[...], w1_ref[...], preferred_element_type=jnp.float32) + b1_ref[...]
    h = jnp.maximum(h, 0.0).astype(jnp.bfloat16)
    o_ref[...] = (jnp.dot(h, w2_ref[...], preferred_element_type=jnp.float32)
                  + b2_ref[...]).astype(o_ref.dtype)


def pallas_mlp2(x, w1, b1, w2, b2):
    """Fused 2-layer MLP (ReLU after layer 1) — ref_point_head."""
    M, Din = x.shape
    H1 = w1.shape[1]
    Dout = w2.shape[1]
    tm = _tile_pad(M, _M_CAP)
    cost = pl.CostEstimate(flops=int(2 * M * (Din * H1 + H1 * Dout)), transcendentals=0,
                           bytes_accessed=int(2 * (M * Din + Din * H1 + H1 * Dout + M * Dout)))
    return pl.pallas_call(
        _mlp2_kernel,
        grid=(pl.cdiv(M, tm),),
        in_specs=[pl.BlockSpec((tm, Din), lambda i: (i, 0)),
                  pl.BlockSpec((Din, H1), lambda i: (0, 0)),
                  pl.BlockSpec((1, H1), lambda i: (0, 0)),
                  pl.BlockSpec((H1, Dout), lambda i: (0, 0)),
                  pl.BlockSpec((1, Dout), lambda i: (0, 0))],
        out_specs=pl.BlockSpec((tm, Dout), lambda i: (i, 0)),
        out_shape=jax.ShapeDtypeStruct((M, Dout), jnp.bfloat16),
        compiler_params=_cparams(("parallel",)),
        cost_estimate=cost,
    )(x, w1, b1.reshape(1, H1), w2, b2.reshape(1, Dout))


def _mlp3_kernel(x_ref, w1_ref, b1_ref, w2_ref, b2_ref, w3_ref, b3_ref, o_ref):
    h = jnp.dot(x_ref[...], w1_ref[...], preferred_element_type=jnp.float32) + b1_ref[...]
    h = jnp.maximum(h, 0.0).astype(jnp.bfloat16)
    h = jnp.dot(h, w2_ref[...], preferred_element_type=jnp.float32) + b2_ref[...]
    h = jnp.maximum(h, 0.0).astype(jnp.bfloat16)
    o_ref[...] = (jnp.dot(h, w3_ref[...], preferred_element_type=jnp.float32)
                  + b3_ref[...]).astype(o_ref.dtype)


def pallas_mlp3(x, w1, b1, w2, b2, w3, b3):
    """Fused 3-layer MLP (ReLU after layers 1, 2) — bbox_embed; output kept f32."""
    M, Din = x.shape
    H1, H2, Dout = w1.shape[1], w2.shape[1], w3.shape[1]
    tm = _tile_pad(M, _M_CAP)
    cost = pl.CostEstimate(flops=int(2 * M * (Din * H1 + H1 * H2 + H2 * Dout)),
                           transcendentals=0,
                           bytes_accessed=int(2 * (M * Din + Din * H1 + H1 * H2 + H2 * Dout)
                                              + 4 * M * Dout))
    return pl.pallas_call(
        _mlp3_kernel,
        grid=(pl.cdiv(M, tm),),
        in_specs=[pl.BlockSpec((tm, Din), lambda i: (i, 0)),
                  pl.BlockSpec((Din, H1), lambda i: (0, 0)),
                  pl.BlockSpec((1, H1), lambda i: (0, 0)),
                  pl.BlockSpec((H1, H2), lambda i: (0, 0)),
                  pl.BlockSpec((1, H2), lambda i: (0, 0)),
                  pl.BlockSpec((H2, Dout), lambda i: (0, 0)),
                  pl.BlockSpec((1, Dout), lambda i: (0, 0))],
        out_specs=pl.BlockSpec((tm, Dout), lambda i: (i, 0)),
        out_shape=jax.ShapeDtypeStruct((M, Dout), jnp.float32),
        compiler_params=_cparams(("parallel",)),
        cost_estimate=cost,
    )(x, w1, b1.reshape(1, H1), w2, b2.reshape(1, H2), w3, b3.reshape(1, Dout))


def _make_mha_kernel(nheads, scale):
    def kernel(q_ref, k_ref, v_ref, wo_ref, bo_ref, out_ref):
        L = q_ref.shape[1]
        D = wo_ref.shape[2]
        acc = jnp.zeros((L, D), jnp.float32)
        for h in range(nheads):                     # static unrolled; H is small
            qh = q_ref[0, :, h, :]                  # (L, Dh) bf16
            kh = k_ref[0, :, h, :]
            vh = v_ref[0, :, h, :]
            s = jax.lax.dot_general(qh, kh, (((1,), (1,)), ((), ())),
                                    preferred_element_type=jnp.float32) * scale
            s = s - jnp.max(s, axis=-1, keepdims=True)
            p = jnp.exp(s)                          # f32 softmax
            p = p * pl.reciprocal(jnp.sum(p, axis=-1, keepdims=True), approx=True)
            oh = jnp.dot(p.astype(vh.dtype), vh, preferred_element_type=jnp.float32)
            # fused output projection: accumulate o_h @ Wo[h] into the lane-dense acc
            acc = acc + jnp.dot(oh.astype(jnp.bfloat16), wo_ref[h],
                                preferred_element_type=jnp.float32)
        out_ref[0] = (acc + bo_ref[...]).astype(out_ref.dtype)
    return kernel


def pallas_mha(q, k, v, wo_r, bo, scale):
    """Multi-head self attention with the output projection fused in.
    q/k/v: (B, L, H, Dh) bf16 (free views of the projection outputs),
    wo_r: (H, Dh, D) bf16, bo: (D,) f32  ->  (B, L, D) bf16 with lane-dense stores."""
    B, L, H, Dh = q.shape
    D = H * Dh
    cost = pl.CostEstimate(flops=int(B * (4 * H * L * L * Dh + 2 * L * D * D)),
                           transcendentals=int(B * H * L * L),
                           bytes_accessed=int(2 * (4 * B * L * D + D * D)))
    return pl.pallas_call(
        _make_mha_kernel(H, scale),
        grid=(B,),
        in_specs=[pl.BlockSpec((1, L, H, Dh), lambda b: (b, 0, 0, 0)),
                  pl.BlockSpec((1, L, H, Dh), lambda b: (b, 0, 0, 0)),
                  pl.BlockSpec((1, L, H, Dh), lambda b: (b, 0, 0, 0)),
                  pl.BlockSpec((H, Dh, D), lambda b: (0, 0, 0)),
                  pl.BlockSpec((1, D), lambda b: (0, 0))],
        out_specs=pl.BlockSpec((1, L, D), lambda b: (b, 0, 0)),
        out_shape=jax.ShapeDtypeStruct((B, L, D), jnp.bfloat16),
        compiler_params=_cparams(("parallel",)),
        cost_estimate=cost,
    )(q, k, v, wo_r, bo.reshape(1, D))


def _gather_kernel(idx_ref, w_ref, v_ref, o_ref):
    idx = idx_ref[0]                               # (Lq, T) int32 flat spatial indices
    w = w_ref[0]                                   # (Lq, T) f32 bilinear*valid*attn weights
    hw = v_ref.shape[1]
    lq, taps = idx.shape
    hw_iota = jax.lax.broadcasted_iota(jnp.int32, (lq, hw), 1)
    wc = jnp.zeros((lq, hw), jnp.float32)
    for t in range(taps):                          # taps = 4 * npoints, static & small
        wc = wc + jnp.where(hw_iota == idx[:, t:t + 1], w[:, t:t + 1], 0.0)
    o_ref[0] = jnp.dot(wc.astype(jnp.bfloat16), v_ref[0],
                       preferred_element_type=jnp.float32)


def pallas_sample_accumulate(value_l, idx, w):
    """sum_t w[..,t] * value_l[.., idx[..,t], :]  computed as a weighted one-hot matmul
    on the MXU against the VMEM-resident level value (bilinear grid-sample + attention
    weighting + point-sum, fused).  value_l:(BH,HW,Dh) bf16 -> (BH,Lq,Dh) f32."""
    BH, HW, Dh = value_l.shape
    Lq, T = idx.shape[1], idx.shape[2]
    if Lq * HW * 4 > 8 * 1024 * 1024:
        # TODO(synk): tile Lq inside the kernel for very large feature levels; fall back
        # to an XLA gather until then.
        g = jax.vmap(lambda vv, ii: vv[ii])(value_l, idx)          # (BH, Lq, T, Dh)
        return jnp.einsum('bqt,bqtd->bqd', w, g.astype(jnp.float32))
    cost = pl.CostEstimate(flops=int(2 * BH * Lq * HW * Dh), transcendentals=0,
                           bytes_accessed=int(2 * BH * HW * Dh + 8 * BH * Lq * T
                                              + 4 * BH * Lq * Dh))
    return pl.pallas_call(
        _gather_kernel,
        grid=(BH,),
        in_specs=[pl.BlockSpec((1, Lq, T), lambda i: (i, 0, 0)),
                  pl.BlockSpec((1, Lq, T), lambda i: (i, 0, 0)),
                  pl.BlockSpec((1, HW, Dh), lambda i: (i, 0, 0))],
        out_specs=pl.BlockSpec((1, Lq, Dh), lambda i: (i, 0, 0)),
        out_shape=jax.ShapeDtypeStruct((BH, Lq, Dh), jnp.float32),
        compiler_params=_cparams(("parallel",)),
        cost_estimate=cost,
    )(idx, w, value_l)


# ----------------------------------------------------------------------------
# Plain-JAX glue (tiny, element-wise / index math only)
# ----------------------------------------------------------------------------
def inverse_sigmoid(x, eps=1e-5):
    x = jnp.clip(x, 0.0, 1.0)
    x1 = jnp.clip(x, eps, None)
    x2 = jnp.clip(1.0 - x, eps, None)
    return jnp.log(x1 / x2)


def gen_sineembed_for_position(pos, num_feats):
    """pos: (B, nq, 4) in (cx, cy, w, h) -> (B, nq, 4*num_feats), order [y, x, w, h]."""
    scale = 2.0 * math.pi
    dim_t = (jnp.arange(num_feats) // 2).astype(jnp.float32)
    dim_t = 10000.0 ** (2.0 * dim_t / num_feats)

    def enc(e):
        p = e[..., None] * scale / dim_t
        s = jnp.sin(p[..., 0::2])
        c = jnp.cos(p[..., 1::2])
        return jnp.stack((s, c), axis=-1).reshape(e.shape + (num_feats,))

    return jnp.concatenate(
        [enc(pos[..., 1]), enc(pos[..., 0]), enc(pos[..., 2]), enc(pos[..., 3])], axis=-1)


def _tap_indices_weights(grid_l, aw_l, Hs, Ws):
    """Bilinear taps of F.grid_sample(align_corners=False, padding='zeros').
    grid_l: (BH, Lq, P, 2) in [-1,1]; aw_l: (BH, Lq, P) attention weights.
    Returns flat indices (BH, Lq, 4P) int32 and fused weights (BH, Lq, 4P) f32."""
    gx = (grid_l[..., 0] + 1.0) * Ws * 0.5 - 0.5
    gy = (grid_l[..., 1] + 1.0) * Hs * 0.5 - 0.5
    x0 = jnp.floor(gx)
    y0 = jnp.floor(gy)
    lx, ly = gx - x0, gy - y0
    hx, hy = 1.0 - lx, 1.0 - ly
    idxs, ws = [], []
    for dx, dy, wt in ((0, 0, hx * hy), (1, 0, lx * hy), (0, 1, hx * ly), (1, 1, lx * ly)):
        xi = x0 + dx
        yi = y0 + dy
        valid = ((xi >= 0) & (xi <= Ws - 1) & (yi >= 0) & (yi <= Hs - 1)).astype(jnp.float32)
        xc = jnp.clip(xi, 0, Ws - 1).astype(jnp.int32)
        yc = jnp.clip(yi, 0, Hs - 1).astype(jnp.int32)
        idxs.append(yc * Ws + xc)
        ws.append(wt * valid * aw_l)
    idx = jnp.stack(idxs, axis=-1)                 # (BH, Lq, P, 4)
    w = jnp.stack(ws, axis=-1)
    return (idx.reshape(idx.shape[0], idx.shape[1], -1),
            w.reshape(w.shape[0], w.shape[1], -1))


# ----------------------------------------------------------------------------
# Modules (functional)
# ----------------------------------------------------------------------------
def self_attention(q_in, v_in, p, nheads):
    """nn.MultiheadAttention (no mask, eval).  q_in = k_in = tgt+pos, v_in = tgt.
    QK projections fused in one matmul; head split is a free view; SDPA + out-proj fused."""
    B, L, D = q_in.shape
    Dh = D // nheads
    qk = pallas_linear(q_in.reshape(B * L, D), p['wqk'], p['bqk'])     # (BL, 2D) bf16
    v = pallas_linear(v_in.reshape(B * L, D), p['wv'], p['bv'])
    q = qk[:, :D].reshape(B, L, nheads, Dh)
    k = qk[:, D:].reshape(B, L, nheads, Dh)
    v = v.reshape(B, L, nheads, Dh)
    wo_r = p['wo'].reshape(nheads, Dh, D)
    return pallas_mha(q, k, v, wo_r, p['bo'], scale=1.0 / math.sqrt(Dh))   # (B, L, D)


def ms_deform_attn(query, reference_points, value_in, spatial_shapes, p,
                   nheads, nlevels, npoints):
    """MultiScaleDeformableAttention (batch-major).
    query: (B, Lq, D) bf16, reference_points: (B, Lq, nlevels, 4) f32,
    value_in: (B, Lin, D) bf16."""
    B, Lq, D = query.shape
    Lin = value_in.shape[1]
    Dh = D // nheads
    n_off = nheads * nlevels * npoints * 2

    value = pallas_linear(value_in.reshape(B * Lin, D), p['w_value'], p['b_value'])
    value = value.reshape(B, Lin, nheads, Dh)                          # bf16
    # fused sampling-offset + attention-weight projection (same input query)
    offaw = pallas_linear(query.reshape(B * Lq, D), p['w_offaw'], p['b_offaw'],
                          out_dtype=jnp.float32)
    off = offaw[:, :n_off].reshape(B, Lq, nheads, nlevels, npoints, 2)
    aw = offaw[:, n_off:].reshape(B, Lq, nheads, nlevels * npoints)
    aw = jax.nn.softmax(aw, axis=-1).reshape(B, Lq, nheads, nlevels, npoints)

    # reference_points last dim == 4: (cx, cy, w, h)
    loc = (reference_points[:, :, None, :, None, :2]
           + off / npoints * reference_points[:, :, None, :, None, 2:] * 0.5)
    grids = 2.0 * loc - 1.0                                            # (B, Lq, H, L, P, 2)

    out = jnp.zeros((B * nheads, Lq, Dh), jnp.float32)
    start = 0
    for lid, (Hs, Ws) in enumerate(spatial_shapes):
        hw = Hs * Ws
        value_l = value[:, start:start + hw]                           # (B, hw, H, Dh)
        start += hw
        value_l = value_l.transpose(0, 2, 1, 3).reshape(B * nheads, hw, Dh)
        grid_l = grids[:, :, :, lid].transpose(0, 2, 1, 3, 4).reshape(B * nheads, Lq, npoints, 2)
        aw_l = aw[:, :, :, lid].transpose(0, 2, 1, 3).reshape(B * nheads, Lq, npoints)
        idx, w = _tap_indices_weights(grid_l, aw_l, Hs, Ws)
        out = out + pallas_sample_accumulate(value_l, idx, w)

    out = out.reshape(B, nheads, Lq, Dh).transpose(0, 2, 1, 3).reshape(B * Lq, D)
    out = pallas_linear(out.astype(jnp.bfloat16), p['w_out'], p['b_out'])
    return out.reshape(B, Lq, D)


def decoder_layer_forward(tgt, query_pos, reference_points_input, memory,
                          spatial_shapes, p, dec_norm_g, dec_norm_b, cfg):
    """DeformableTransformerDecoderLayer: self-attn -> cross-attn (MSDeform) -> FFN.
    Returns (layer output, decoder-norm of the layer output)."""
    B, nq, D = tgt.shape
    # self attention + fused residual-add + LayerNorm (norm2)
    q = tgt + query_pos
    tgt2 = self_attention(q, tgt, p['self_attn'], cfg['nheads'])
    tgt = pallas_add_layernorm(tgt.reshape(B * nq, D), tgt2.reshape(B * nq, D),
                               p['norm2_g'], p['norm2_b']).reshape(B, nq, D)
    # cross attention (deformable) + fused residual-add + LayerNorm (norm1)
    q_cross = tgt + query_pos
    tgt2 = ms_deform_attn(q_cross, reference_points_input, memory, spatial_shapes,
                          p['cross_attn'], cfg['nheads'], cfg['nlevels'], cfg['npoints'])
    tgt = pallas_add_layernorm(tgt.reshape(B * nq, D), tgt2.reshape(B * nq, D),
                               p['norm1_g'], p['norm1_b']).reshape(B, nq, D)
    # FFN fully fused (linear-relu-linear + residual + norm3 + decoder-level norm)
    out, out_normed = pallas_ffn(tgt.reshape(B * nq, D), p['ffn_w1'], p['ffn_b1'],
                                 p['ffn_w2'], p['ffn_b2'], p['norm3_g'], p['norm3_b'],
                                 dec_norm_g, dec_norm_b)
    return out.reshape(B, nq, D), out_normed.reshape(B, nq, D)


def transformer_decoder_forward(tgt, memory, refpoints_unsigmoid, valid_ratios,
                                spatial_shapes, params, cfg):
    """TransformerDecoder.forward (eval, deformable, query_dim=4, return_intermediate=True,
    query_scale=None, bbox_embed provided).  Inputs follow the PyTorch (seq, batch, D)
    convention; internally everything runs batch-major so the reference's final
    transpose(0, 1) is free."""
    D = cfg['d_model']
    num_feats = D // 2
    nq, B, _ = tgt.shape

    output = tgt.transpose(1, 0, 2).astype(jnp.bfloat16)               # (B, nq, D)
    mem = memory.transpose(1, 0, 2).astype(jnp.bfloat16)               # (B, hw, D)
    reference_points = jax.nn.sigmoid(refpoints_unsigmoid.transpose(1, 0, 2))   # (B, nq, 4)
    ref_points = [reference_points]
    intermediate = []
    vr = jnp.concatenate([valid_ratios, valid_ratios], axis=-1)        # (B, L, 4)

    for layer_id in range(cfg['num_layers']):
        rp_input = reference_points[:, :, None, :] * vr[:, None, :, :]           # (B, nq, L, 4)
        qse = gen_sineembed_for_position(rp_input[:, :, 0, :], num_feats)        # (B, nq, 2D)
        query_pos = pallas_mlp2(qse.reshape(B * nq, 2 * D).astype(jnp.bfloat16),
                                params['rph_w1'], params['rph_b1'],
                                params['rph_w2'], params['rph_b2']).reshape(B, nq, D)
        # pos_scale == 1 (query_scale is None)

        output, normed = decoder_layer_forward(output, query_pos, rp_input, mem,
                                               spatial_shapes, params['layers'][layer_id],
                                               params['norm_g'], params['norm_b'], cfg)

        # bbox_embed branch (iterative box refinement) -- fused 3-layer MLP
        bb = params['bbox_embed'][layer_id]
        delta_unsig = pallas_mlp3(output.reshape(B * nq, D), bb['w1'], bb['b1'],
                                  bb['w2'], bb['b2'], bb['w3'], bb['b3']).reshape(B, nq, 4)
        new_ref = jax.nn.sigmoid(delta_unsig + inverse_sigmoid(reference_points))
        reference_points = jax.lax.stop_gradient(new_ref)
        ref_points.append(new_ref)

        intermediate.append(normed)                                    # already (B, nq, D) f32

    return intermediate, ref_points


# ----------------------------------------------------------------------------
# Deterministic parameter init (synthetic, not a checkpoint)
# ----------------------------------------------------------------------------
def init_params(key, cfg):
    D, Dff = cfg['d_model'], cfg['dim_ff']
    H, L, P = cfg['nheads'], cfg['nlevels'], cfg['npoints']
    keys = iter(jax.random.split(key, 256))

    def lin(din, dout):
        w = (jax.random.normal(next(keys), (din, dout), jnp.float32)
             / math.sqrt(din)).astype(jnp.bfloat16)                  # matmul weights: bf16
        return w, jnp.zeros((dout,), jnp.float32)                    # biases: f32

    def ln():
        return jnp.ones((D,), jnp.float32), jnp.zeros((D,), jnp.float32)

    layers = []
    for _ in range(cfg['num_layers']):
        p = {}
        sa = {}
        sa['wqk'], sa['bqk'] = lin(D, 2 * D)         # fused Q|K projection
        sa['wv'], sa['bv'] = lin(D, D)
        sa['wo'], sa['bo'] = lin(D, D)
        p['self_attn'] = sa
        ca = {}
        ca['w_value'], ca['b_value'] = lin(D, D)
        ca['w_offaw'], ca['b_offaw'] = lin(D, H * L * P * 2 + H * L * P)   # fused off|aw
        ca['w_out'], ca['b_out'] = lin(D, D)
        p['cross_attn'] = ca
        p['ffn_w1'], p['ffn_b1'] = lin(D, Dff)
        p['ffn_w2'], p['ffn_b2'] = lin(Dff, D)
        p['norm1_g'], p['norm1_b'] = ln()
        p['norm2_g'], p['norm2_b'] = ln()
        p['norm3_g'], p['norm3_b'] = ln()
        layers.append(p)

    bbox = []
    for _ in range(cfg['num_layers']):
        bb = {}
        bb['w1'], bb['b1'] = lin(D, D)
        bb['w2'], bb['b2'] = lin(D, D)
        bb['w3'], bb['b3'] = lin(D, 4)
        bbox.append(bb)

    params = {'layers': layers, 'bbox_embed': bbox}
    params['rph_w1'], params['rph_b1'] = lin(2 * D, D)   # ref_point_head MLP(2D, D, D, 2)
    params['rph_w2'], params['rph_b2'] = lin(D, D)
    params['norm_g'], params['norm_b'] = ln()            # decoder-level LayerNorm(d_model)
    return params


# ----------------------------------------------------------------------------
if __name__ == "__main__":
    cfg = dict(d_model=32, nheads=4, nlevels=1, npoints=4, dim_ff=64,
               num_layers=2, query_dim=4)
    nq, bs = 8, 2
    Hs, Ws = 8, 8
    hw = Hs * Ws
    spatial_shapes = [(Hs, Ws)]

    key = jax.random.PRNGKey(0)
    k_p, k_t, k_m, k_r = jax.random.split(key, 4)
    params = init_params(k_p, cfg)

    tgt = jax.random.normal(k_t, (nq, bs, cfg['d_model']), jnp.float32)
    memory = jax.random.normal(k_m, (hw, bs, cfg['d_model']), jnp.float32)
    refpoints_unsigmoid = jax.random.normal(k_r, (nq, bs, 4), jnp.float32)
    valid_ratios = jnp.ones((bs, cfg['nlevels'], 2), jnp.float32)

    intermediate, ref_points = transformer_decoder_forward(
        tgt, memory, refpoints_unsigmoid, valid_ratios, spatial_shapes, params, cfg)

    jax.block_until_ready(intermediate)
    jax.block_until_ready(ref_points)

    assert len(intermediate) == cfg['num_layers']
    assert intermediate[0].shape == (bs, nq, cfg['d_model'])
    assert len(ref_points) == cfg['num_layers'] + 1
    assert ref_points[0].shape == (bs, nq, 4)
    print("KERNEL_OK")
</pallas_src>

<mosaic_0001>
module attributes {stable_mosaic.version = 11 : i64} {
  func.func @_mlp2_kernel(%arg0: i32, %arg1: memref<16x64xbf16, #tpu.memory_space<vmem>>, %arg2: memref<64x32xbf16, #tpu.memory_space<vmem>>, %arg3: memref<1x32xf32, #tpu.memory_space<vmem>>, %arg4: memref<32x32xbf16, #tpu.memory_space<vmem>>, %arg5: memref<1x32xf32, #tpu.memory_space<vmem>>, %arg6: memref<16x32xbf16, #tpu.memory_space<vmem>>) attributes {dimension_semantics = [#tpu.dimension_semantics<parallel>], iteration_bounds = array<i64: 1>, scalar_prefetch = 0 : i64, scratch_operands = 0 : i64, tpu.core_type = #tpu.core_type<tc>, window_params = [{transform_indices = @transform_0, window_bounds = array<i64: 16, 64>}, {pipeline_mode = #tpu.pipeline_mode<synchronous>, transform_indices = @transform_1, window_bounds = array<i64: 64, 32>}, {pipeline_mode = #tpu.pipeline_mode<synchronous>, transform_indices = @transform_2, window_bounds = array<i64: 1, 32>}, {pipeline_mode = #tpu.pipeline_mode<synchronous>, transform_indices = @transform_3, window_bounds = array<i64: 32, 32>}, {pipeline_mode = #tpu.pipeline_mode<synchronous>, transform_indices = @transform_4, window_bounds = array<i64: 1, 32>}, {transform_indices = @transform_5, window_bounds = array<i64: 16, 32>}]} {
    %c0 = arith.constant 0 : index
    %c0_0 = arith.constant 0 : index
    %0 = vector.load %arg1[%c0, %c0_0] : memref<16x64xbf16, #tpu.memory_space<vmem>>, vector<16x64xbf16>
    %c0_1 = arith.constant 0 : index
    %c0_2 = arith.constant 0 : index
    %1 = vector.load %arg2[%c0_1, %c0_2] : memref<64x32xbf16, #tpu.memory_space<vmem>>, vector<64x32xbf16>
    %cst = arith.constant dense<0.000000e+00> : vector<16x32xf32>
    %2 = tpu.matmul %0, %1, %cst {dimension_numbers = #tpu.dot_dimension_numbers<[1], [0], [0], [1], [0, 0, 1, 1], [], []>} : vector<16x64xbf16>, vector<64x32xbf16>, vector<16x32xf32> -> vector<16x32xf32>
    %c0_3 = arith.constant 0 : index
    %c0_4 = arith.constant 0 : index
    %3 = vector.load %arg3[%c0_3, %c0_4] : memref<1x32xf32, #tpu.memory_space<vmem>>, vector<1x32xf32>
    %4 = vector.broadcast %3 : vector<1x32xf32> to vector<16x32xf32>
    %5 = arith.addf %2, %4 : vector<16x32xf32>
    %cst_5 = arith.constant 0.000000e+00 : f32
    %6 = vector.broadcast %cst_5 : f32 to vector<16x32xf32>
    %7 = arith.maximumf %5, %6 : vector<16x32xf32>
    %8 = arith.truncf %7 : vector<16x32xf32> to vector<16x32xbf16>
    %c0_6 = arith.constant 0 : index
    %c0_7 = arith.constant 0 : index
    %9 = vector.load %arg4[%c0_6, %c0_7] : memref<32x32xbf16, #tpu.memory_space<vmem>>, vector<32x32xbf16>
    %cst_8 = arith.constant dense<0.000000e+00> : vector<16x32xf32>
    %10 = tpu.matmul %8, %9, %cst_8 {dimension_numbers = #tpu.dot_dimension_numbers<[1], [0], [0], [1], [0, 0, 1, 1], [], []>} : vector<16x32xbf16>, vector<32x32xbf16>, vector<16x32xf32> -> vector<16x32xf32>
    %c0_9 = arith.constant 0 : index
    %c0_10 = arith.constant 0 : index
    %11 = vector.load %arg5[%c0_9, %c0_10] : memref<1x32xf32, #tpu.memory_space<vmem>>, vector<1x32xf32>
    %12 = vector.broadcast %11 : vector<1x32xf32> to vector<16x32xf32>
    %13 = arith.addf %10, %12 : vector<16x32xf32>
    %14 = arith.truncf %13 : vector<16x32xf32> to vector<16x32xbf16>
    %c0_11 = arith.constant 0 : index
    %c0_12 = arith.constant 0 : index
    %15 = vector.load %arg6[%c0_11, %c0_12] : memref<16x32xbf16, #tpu.memory_space<vmem>>, vector<16x32xbf16>
    tpu.vector_store %arg6[%c0_11, %c0_12], %14 {strides = array<i32>} : memref<16x32xbf16, #tpu.memory_space<vmem>>, vector<16x32xbf16>,
    return
  }
  func.func @transform_0(%arg0: i32) -> (i32, i32) {
    %c0_i32 = arith.constant 0 : i32
    %c0_i32_0 = arith.constant 0 : i32
    return %arg0, %c0_i32 : i32, i32
  }
  func.func @transform_1(%arg0: i32) -> (i32, i32) {
    %c0_i32 = arith.constant 0 : i32
    %c0_i32_0 = arith.constant 0 : i32
    %c0_i32_1 = arith.constant 0 : i32
    return %c0_i32, %c0_i32_0 : i32, i32
  }
  func.func @transform_2(%arg0: i32) -> (i32, i32) {
    %c0_i32 = arith.constant 0 : i32
    %c0_i32_0 = arith.constant 0 : i32
    %c0_i32_1 = arith.constant 0 : i32
    return %c0_i32, %c0_i32_0 : i32, i32
  }
  func.func @transform_3(%arg0: i32) -> (i32, i32) {
    %c0_i32 = arith.constant 0 : i32
    %c0_i32_0 = arith.constant 0 : i32
    %c0_i32_1 = arith.constant 0 : i32
    return %c0_i32, %c0_i32_0 : i32, i32
  }
  func.func @transform_4(%arg0: i32) -> (i32, i32) {
    %c0_i32 = arith.constant 0 : i32
    %c0_i32_0 = arith.constant 0 : i32
    %c0_i32_1 = arith.constant 0 : i32
    return %c0_i32, %c0_i32_0 : i32, i32
  }
  func.func @transform_5(%arg0: i32) -> (i32, i32) {
    %c0_i32 = arith.constant 0 : i32
    %c0_i32_0 = arith.constant 0 : i32
    return %arg0, %c0_i32 : i32, i32
  }
}

</mosaic_0001>

<llo_original>
// kernel: tpu_custom_call.1
$region0: #{tpu_custom_call.1}
  #allocation0 [shape = 'u32[]', space=smem, size = 0x4, offset = 0x4, fixed_abs, tag = 'smem constant byte address 0x4 - core index']
  #allocation1 [shape = 'u32[144,128]{1,0:T(1,128)}', space=vmem, size = 0x12000, scoped, tag = 'internal scratch']
  %s0 = inlined_call_operand.vmem [shape: bf16[16,64], index: 0, kind: input, shape index: {}]
  %s1 = inlined_call_operand.vmem [shape: bf16[64,32], index: 1, kind: input, shape index: {}]
  %s2 = inlined_call_operand.vmem [shape: f32[1,32], index: 2, kind: input, shape index: {}]
  %s3 = inlined_call_operand.vmem [shape: bf16[32,32], index: 3, kind: input, shape index: {}]
  %s4 = inlined_call_operand.vmem [shape: f32[1,32], index: 4, kind: input, shape index: {}]
  %s5 = inlined_call_operand.hbm [shape: bf16[16,32], index: 5, kind: output, shape index: {}]
  %s6 = sld [smem:[#allocation0]]
  $region30: #{tpu_custom_call.1} parent=0
    _
  %s8 = ssub.s32 1, %s6
  %s9 = scalar_select 0, %s8, %s6
  $region1: #{tpu_custom_call.1} parent=0
    #allocation2 [shape = 'u8[4096]{0}', space=vmem, size = 0x1000, scoped, tag = 'output window, operand 0, single buffered']
    #allocation3 [shape = 's32[1]{0}', space=sflag, size = 0x4, scoped, tag = 'scoped memory for tpu_custom_call.1']
    %10 = vsyncpa [#allocation3], 0
    // Predicated region
    $region2: #{tpu_custom_call.1} parent=1 // pred_check
      _
    $region3: #{tpu_custom_call.1} parent=1 // pred_check_branch
      %12 = sbr.rel (0) target = $region5
    $region4: #{tpu_custom_call.1} parent=1 // pred_region
      _
    $region5: #{tpu_custom_call.1} parent=1 // pred_fallthru
      _
    // Predicated region
    $region6: #{tpu_custom_call.1} parent=1 // pred_check
      _
    $region7: #{tpu_custom_call.1} parent=1 // pred_check_branch
      %14 = sbr.rel (0) target = $region9
    $region8: #{tpu_custom_call.1} parent=1 // pred_region
      _
    $region9: #{tpu_custom_call.1} parent=1 // pred_fallthru
      _
    // Predicated region
    $region10: #{tpu_custom_call.1} parent=1 // pred_check
      _
    $region11: #{tpu_custom_call.1} parent=1 // pred_check_branch
      %16 = sbr.rel (0) target = $region13
    $region12: #{tpu_custom_call.1} parent=1 // pred_region
      _
    $region13: #{tpu_custom_call.1} parent=1 // pred_fallthru
      _
    // Predicated region
    $region14: #{tpu_custom_call.1} parent=1 // pred_check
      _
    $region15: #{tpu_custom_call.1} parent=1 // pred_check_branch
      %18 = sbr.rel (0) target = $region17
    $region16: #{tpu_custom_call.1} parent=1 // pred_region
      _
    $region17: #{tpu_custom_call.1} parent=1 // pred_fallthru
      _
    // Predicated region
    $region18: #{tpu_custom_call.1} parent=1 // pred_check
      _
    $region19: #{tpu_custom_call.1} parent=1 // pred_check_branch
      %20 = sbr.rel (0) target = $region21
    $region20: #{tpu_custom_call.1} parent=1 // pred_region
      _
    $region21: #{tpu_custom_call.1} parent=1 // pred_fallthru
      _
    %v22 = vld [vmem:[%s0] sm:$0xf]
    %v23 = vld [vmem:[%s0 + $0x4] sm:$0xf]
    %v24 = vld [vmem:[%s1] sm:$0xf]
    %v25 = vld [vmem:[%s1 + $0x4] sm:$0xf]
    %v26 = vld [vmem:[%s1 + $0x8] sm:$0xf]
    %v27 = vld [vmem:[%s1 + $0xc] sm:$0xf]
    %v28 = vld [vmem:[%s1 + $0x10] sm:$0xf]
    %v29 = vld [vmem:[%s1 + $0x14] sm:$0xf]
    %v30 = vld [vmem:[%s1 + $0x18] sm:$0xf]
    %v31 = vld [vmem:[%s1 + $0x1c] sm:$0xf]
    %v32 = vld [vmem:[%s2] sm:$0x1]
    %v34 = vlaneseq
    %v35 = vshrl.u32 %v34, 7
    %v36 = vsub.s32 0, %v35
    %v37 = vrot.slane %v32, %v36
    %v41 = vunpack.c.l.b16 %v22
    %v42 = vunpack.c.l.b16 %v23
    %v43 = vpack.c.b16 %v42, %v41
    %v52 = vunpack.c.l.b16 %v24
    %v53 = vunpack.c.l.b16 %v25
    %v54 = vunpack.c.l.b16 %v26
    %v55 = vunpack.c.l.b16 %v27
    %v56 = vunpack.c.l.b16 %v28
    %v57 = vunpack.c.l.b16 %v29
    %v58 = vunpack.c.l.b16 %v30
    %v59 = vunpack.c.l.b16 %v31
    %v60 = vpack.c.b16 %v53, %v52
    %v61 = vpack.c.b16 %v55, %v54
    %v62 = vpack.c.b16 %v57, %v56
    %v63 = vpack.c.b16 %v59, %v58
    %vm68 = vcmask 523264
    %v70 = vsel %vm68, %v43, 0
    %72 = vmatprep.subr.bf16.mxu0 0
    %73 = vmatpush1.bf16.msra.mxu0 %v60
    %74 = vmatprep.subr.bf16.mxu0 0
    %75 = vmatpush1.bf16.msra.mxu0 %v61
    %76 = vmatprep.subr.bf16.mxu0 0
    %77 = vmatpush1.bf16.msra.mxu0 %v62
    %78 = vmatprep.subr.bf16.mxu0 0
    %79 = vmatpush1.bf16.msra.mxu0 %v63
    %80 = vmatprep.subr.bf16.mxu0 0
    %81 = vmatpush1.bf16.msra.mxu0 0
    %82 = vmatprep.subr.bf16.mxu0 0
    %83 = vmatpush1.bf16.msra.mxu0 0
    %84 = vmatprep.subr.bf16.mxu0 0
    %85 = vmatpush1.bf16.msra.mxu0 0
    %86 = vmatprep.subr.bf16.mxu0 0
    %87 = vmatpush1.bf16.msra.mxu0 0
    %88 = vmatprep.subr.bf16.mxu0 0
    %89 = vmatpush1.bf16.msra.mxu0 0
    %90 = vmatprep.subr.bf16.mxu0 0
    %91 = vmatpush1.bf16.msra.mxu0 0
    %92 = vmatprep.subr.bf16.mxu0 0
    %93 = vmatpush1.bf16.msra.mxu0 0
    %94 = vmatprep.subr.bf16.mxu0 0
    %95 = vmatpush1.bf16.msra.mxu0 0
    %96 = vmatprep.subr.bf16.mxu0 0
    %97 = vmatpush1.bf16.msra.mxu0 0
    %98 = vmatprep.subr.bf16.mxu0 0
    %99 = vmatpush1.bf16.msra.mxu0 0
    %100 = vmatprep.subr.bf16.mxu0 0
    %101 = vmatpush1.bf16.msra.mxu0 0
    %102 = vmatprep.subr.bf16.mxu0 0
    %103 = vmatpush1.bf16.msra.mxu0 0
    %104 = vmatprep.mubr.bf16.mxu0 0
    %105 = vmatmul.mubr.bf16.gmra.mrb[0].mxu0 %v70
    %v106 = vpop.f32.mrb[0].mxu0
    %v107 = vadd.f32 %v37, %v106
    %v108 = vpop.f32.mrb[0].mxu0
    %v109 = vpop.f32.mrb[0].mxu0
    %v110 = vadd.f32 %v37, %v109
    %v111 = vpop.f32.mrb[0].mxu0
    %112 = vdwg.mxu0
    %v113 = vmax.f32 %v107, 0.0
    %v114 = vmax.f32 %v110, 0.0
    %v115 = vpack.c.bf16 %v114, %v113
    %v116 = vld [vmem:[%s3] sm:$0xf]
    %v117 = vld [vmem:[%s3 + $0x4] sm:$0xf]
    %v118 = vld [vmem:[%s3 + $0x8] sm:$0xf]
    %v119 = vld [vmem:[%s3 + $0xc] sm:$0xf]
    %v120 = vld [vmem:[%s4] sm:$0x1]
    %v122 = vlaneseq
    %v123 = vshrl.u32 %v122, 7
    %v124 = vsub.s32 0, %v123
    %v125 = vrot.slane %v120, %v124
    %v131 = vunpack.c.l.b16 %v116
    %v132 = vunpack.c.l.b16 %v117
    %v133 = vunpack.c.l.b16 %v118
    %v134 = vunpack.c.l.b16 %v119
    %v135 = vpack.c.b16 %v132, %v131
    %v136 = vpack.c.b16 %v134, %v133
    %vm139 = vcmask 261120
    %v141 = vsel %vm139, %v115, 0
    %143 = vmatprep.subr.bf16.mxu0 0
    %144 = vmatpush1.bf16.msra.mxu0 %v135
    %145 = vmatprep.subr.bf16.mxu0 0
    %146 = vmatpush1.bf16.msra.mxu0 %v136
    %147 = vmatprep.subr.bf16.mxu0 0
    %148 = vmatpush1.bf16.msra.mxu0 0
    %149 = vmatprep.subr.bf16.mxu0 0
    %150 = vmatpush1.bf16.msra.mxu0 0
    %151 = vmatprep.subr.bf16.mxu0 0
    %152 = vmatpush1.bf16.msra.mxu0 0
    %153 = vmatprep.subr.bf16.mxu0 0
    %154 = vmatpush1.bf16.msra.mxu0 0
    %155 = vmatprep.subr.bf16.mxu0 0
    %156 = vmatpush1.bf16.msra.mxu0 0
    %157 = vmatprep.subr.bf16.mxu0 0
    %158 = vmatpush1.bf16.msra.mxu0 0
    %159 = vmatprep.subr.bf16.mxu0 0
    %160 = vmatpush1.bf16.msra.mxu0 0
    %161 = vmatprep.subr.bf16.mxu0 0
    %162 = vmatpush1.bf16.msra.mxu0 0
    %163 = vmatprep.subr.bf16.mxu0 0
    %164 = vmatpush1.bf16.msra.mxu0 0
    %165 = vmatprep.subr.bf16.mxu0 0
    %166 = vmatpush1.bf16.msra.mxu0 0
    %167 = vmatprep.subr.bf16.mxu0 0
    %168 = vmatpush1.bf16.msra.mxu0 0
    %169 = vmatprep.subr.bf16.mxu0 0
    %170 = vmatpush1.bf16.msra.mxu0 0
    %171 = vmatprep.subr.bf16.mxu0 0
    %172 = vmatpush1.bf16.msra.mxu0 0
    %173 = vmatprep.subr.bf16.mxu0 0
    %174 = vmatpush1.bf16.msra.mxu0 0
    %175 = vmatprep.mubr.bf16.mxu0 0
    %176 = vmatmul.mubr.bf16.gmra.mrb[0].mxu0 %v141
    %v177 = vpop.f32.mrb[0].mxu0
    %v178 = vadd.f32 %v125, %v177
    %v179 = vpop.f32.mrb[0].mxu0
    %v180 = vpop.f32.mrb[0].mxu0
    %v181 = vadd.f32 %v125, %v180
    %v182 = vpop.f32.mrb[0].mxu0
    %183 = vdwg.mxu0
    %v184 = vpack.c.bf16 %v181, %v178
    %v186 = vunpack.c.l.b16 %v184
    %v187 = vunpack.c.h.b16 %v184
    %v188 = vpack.c.b16 %v186, %v186
    %v189 = vpack.c.b16 %v187, %v187
    %vm192 = vcmask 257024
    %193 = vst.msk [vmem:[#allocation2] sm:$0xf] %vm192, %v188
    %194 = vst.msk [vmem:[#allocation2 + $0x4] sm:$0xf] %vm192, %v189
    // Predicated region
    $region22: #{tpu_custom_call.1} parent=1 // pred_check
      _
    $region23: #{tpu_custom_call.1} parent=1 // pred_check_branch
      %196 = sbr.rel (0) target = $region25
    $region24: #{tpu_custom_call.1} parent=1 // pred_region
      %s198 = ssub.s32 128, 128
      %199 = vsyncadd [#allocation3], %s198
      %s200 = sshll.u32 [#allocation2], 4
      %s201 = int_to_ptr.vmem [resolvable:$true] %s200
      %206 = dma.vmem_to_hbm [thread:$0]  %s201, 128, %s5, [#allocation3], 64, 64, 4
    $region25: #{tpu_custom_call.1} parent=1 // pred_fallthru
      _
    // Predicated region
    $region26: #{tpu_custom_call.1} parent=1 // pred_check
      _
    $region27: #{tpu_custom_call.1} parent=1 // pred_check_branch
      %208 = sbr.rel (0) target = $region29
    $region28: #{tpu_custom_call.1} parent=1 // pred_region
      %209 = dma.done [#allocation3], 128
    $region29: #{tpu_custom_call.1} parent=1 // pred_fallthru
      _
    %210 = vsyncpa [#allocation3], 1

</llo_original>
